<compile_context>
chip_gen: v5e
topology: v5e:2x2
jax: 0.10.0
libtpu: 0.0.40
codegen_flags: <defaults>
</compile_context>

<pallas_src>
import functools

import jax
import jax.numpy as jnp
from jax import lax
from jax.experimental import pallas as pl
from jax.experimental.pallas import tpu as pltpu

_EPS = 1e-6
_EPS_SQ = _EPS * _EPS

# Target HBM bytes moved per *input* per grid step (amortizes ~0.35 us/step).
_TARGET_BLOCK_BYTES = 4 * 1024 * 1024


def _identity_diff_loss_kernel(real_ref, fake_ref, partial_ref, *,
                               batch_size, masked):
    """One (tb, D) batch tile.

    Writes sum_over_tile(|1 - cos|) broadcast into this block's (1, 8, 128)
    partial-output slot (lane-dense, unmasked stores).
    """
    x = real_ref[...].astype(jnp.float32)
    y = fake_ref[...].astype(jnp.float32)

    dot = jnp.sum(x * y, axis=1, keepdims=True)
    nx2 = jnp.sum(x * x, axis=1, keepdims=True)
    ny2 = jnp.sum(y * y, axis=1, keepdims=True)

    # PyTorch CosineSimilarity: x.y / (max(||x||, eps) * max(||y||, eps))
    #   == x.y * rsqrt(max(||x||^2, eps^2)) * rsqrt(max(||y||^2, eps^2))
    cos = (dot
           * lax.rsqrt(jnp.maximum(nx2, _EPS_SQ))
           * lax.rsqrt(jnp.maximum(ny2, _EPS_SQ)))
    absdiff = jnp.abs(1.0 - cos)

    if masked:
        # Only emitted when B % tb != 0: zero out the padded rows of the last,
        # partial tile.  Garbage in those rows may yield NaN in `cos`, but
        # where() applied *before* the sum discards it.
        tile = real_ref.shape[0]
        idx = (pl.program_id(0) * tile
               + lax.broadcasted_iota(jnp.int32, absdiff.shape, 0))
        absdiff = jnp.where(idx < batch_size, absdiff, 0.0)

    partial_ref[...] = jnp.full(partial_ref.shape, jnp.sum(absdiff),
                                jnp.float32)


def _vmem_config():
    """(block_budget_bytes, vmem_limit_bytes) derived from this chip's VMEM."""
    cap = 64 * 1024 * 1024  # conservative default == v7x physical VMEM
    try:
        info = pltpu.get_tpu_info()
        cap = int(getattr(info, "vmem_capacity_bytes", cap)) or cap
    except Exception:
        pass
    # Pipelined input blocks + in-kernel f32 temporaries stay under ~half of
    # physical VMEM; raise the scoped limit (16/32 MiB defaults) with headroom.
    block_budget = max(cap // 2, 16 << 20)
    vmem_limit = max(min((cap * 3) // 4, cap - (8 << 20)), 32 << 20)
    return block_budget, vmem_limit


def _pick_batch_tile(batch, feat, itemsize, budget_bytes):
    row_bytes_in = feat * itemsize
    # Resident bytes per batch row: 2 inputs x 2 pipeline buffers (input dtype)
    # plus roughly four full-tile f32 temporaries inside the kernel body.
    per_row_resident = 4 * row_bytes_in + 4 * feat * 4
    max_rows_vmem = max(8, budget_bytes // per_row_resident)
    target_rows = max(8, _TARGET_BLOCK_BYTES // max(1, row_bytes_in))
    tb = min(max_rows_vmem, target_rows)

    # Keep >= 2 grid steps (v7x megacore) when each half is still a big block.
    half_rows = -(-batch // 2)
    if half_rows >= 8 and half_rows * row_bytes_in >= (1 << 20):
        tb = min(tb, half_rows)

    if tb >= batch:
        return batch                      # single full block (no 8-alignment needed)
    return max(8, (tb // 8) * 8)          # (8, .)-aligned partial tiles


def identity_difference_loss(real_embeddings, fake_embeddings, *,
                             block_rows=None):
    """real_embeddings, fake_embeddings: (B, D). Returns scalar f32 loss."""
    assert real_embeddings.shape == fake_embeddings.shape
    assert real_embeddings.ndim == 2
    B, D = real_embeddings.shape
    itemsize = jnp.dtype(real_embeddings.dtype).itemsize

    block_budget, vmem_limit = _vmem_config()
    if block_rows is None:
        tb = _pick_batch_tile(B, D, itemsize, block_budget)
    else:
        tb = min(int(block_rows), B)
        if tb < B:
            tb = max(8, (tb // 8) * 8)

    num_blocks = pl.cdiv(B, tb)
    masked = (B % tb) != 0
    kernel = functools.partial(_identity_diff_loss_kernel,
                               batch_size=B, masked=masked)

    partials = pl.pallas_call(
        kernel,
        out_shape=jax.ShapeDtypeStruct((num_blocks, 8, 128), jnp.float32),
        grid_spec=pl.GridSpec(
            grid=(num_blocks,),
            in_specs=[pl.BlockSpec((tb, D), lambda i: (i, 0)),
                      pl.BlockSpec((tb, D), lambda i: (i, 0))],
            out_specs=pl.BlockSpec((1, 8, 128), lambda i: (i, 0, 0)),
        ),
        compiler_params=pltpu.CompilerParams(
            dimension_semantics=("parallel",),
            vmem_limit_bytes=int(vmem_limit),
        ),
        cost_estimate=pl.CostEstimate(
            flops=6 * B * D,
            transcendentals=2 * B,
            bytes_accessed=2 * B * D * itemsize + num_blocks * 8 * 128 * 4,
        ),
    )(real_embeddings, fake_embeddings)

    # Each block wrote its partial sum at [i, 0, 0]; tiny final reduce + mean.
    return jnp.sum(partials[:, 0, 0]) / B


def _reference(real, fake):
    x = real.astype(jnp.float32)
    y = fake.astype(jnp.float32)
    dot = jnp.sum(x * y, axis=1)
    nx = jnp.sqrt(jnp.sum(x * x, axis=1))
    ny = jnp.sqrt(jnp.sum(y * y, axis=1))
    cos = dot / (jnp.maximum(nx, _EPS) * jnp.maximum(ny, _EPS))
    return jnp.mean(jnp.abs(1.0 - cos))


if __name__ == "__main__":
    key = jax.random.PRNGKey(0)
    k1, k2, k3, k4, k5, k6 = jax.random.split(key, 6)

    # Small feature dim (D < 128): consumed natively (no wrapper transpose).
    B1, D1 = 8, 32
    real1 = jax.random.normal(k1, (B1, D1), dtype=jnp.float32)
    fake1 = jax.random.normal(k2, (B1, D1), dtype=jnp.float32)
    loss1 = identity_difference_loss(real1, fake1)
    jax.block_until_ready(loss1)
    ref1 = _reference(real1, fake1)
    assert jnp.allclose(loss1, ref1, atol=1e-5, rtol=1e-5), (loss1, ref1)

    # Wide feature dim (D >= 128), f32, single full block.
    B2, D2 = 24, 256
    real2 = jax.random.normal(k3, (B2, D2), dtype=jnp.float32)
    fake2 = jax.random.normal(k4, (B2, D2), dtype=jnp.float32)
    loss2 = identity_difference_loss(real2, fake2)
    jax.block_until_ready(loss2)
    ref2 = _reference(real2, fake2)
    assert jnp.allclose(loss2, ref2, atol=1e-5, rtol=1e-5), (loss2, ref2)

    # Multi-block grid with a partial (masked) last tile + bf16 native DMA.
    B3, D3 = 20, 256
    real3 = jax.random.normal(k5, (B3, D3), dtype=jnp.float32).astype(jnp.bfloat16)
    fake3 = jax.random.normal(k6, (B3, D3), dtype=jnp.float32).astype(jnp.bfloat16)
    loss3 = identity_difference_loss(real3, fake3, block_rows=8)
    jax.block_until_ready(loss3)
    ref3 = _reference(real3, fake3)
    assert jnp.allclose(loss3, ref3, atol=3e-5, rtol=3e-5), (loss3, ref3)

    print("KERNEL_OK")
</pallas_src>

<mosaic_0001>
module attributes {stable_mosaic.version = 11 : i64} {
  func.func @_identity_diff_loss_kernel(%arg0: i32, %arg1: memref<8x32xf32, #tpu.memory_space<vmem>>, %arg2: memref<8x32xf32, #tpu.memory_space<vmem>>, %arg3: memref<1x8x128xf32, #tpu.memory_space<vmem>>) attributes {dimension_semantics = [#tpu.dimension_semantics<parallel>], iteration_bounds = array<i64: 1>, scalar_prefetch = 0 : i64, scratch_operands = 0 : i64, tpu.core_type = #tpu.core_type<tc>, window_params = [{transform_indices = @transform_0, window_bounds = array<i64: 8, 32>}, {transform_indices = @transform_1, window_bounds = array<i64: 8, 32>}, {transform_indices = @transform_2, window_bounds = array<i64: 1, 8, 128>}]} {
    %c0 = arith.constant 0 : index
    %c0_0 = arith.constant 0 : index
    %0 = vector.load %arg1[%c0, %c0_0] : memref<8x32xf32, #tpu.memory_space<vmem>>, vector<8x32xf32>
    %c0_1 = arith.constant 0 : index
    %c0_2 = arith.constant 0 : index
    %1 = vector.load %arg2[%c0_1, %c0_2] : memref<8x32xf32, #tpu.memory_space<vmem>>, vector<8x32xf32>
    %2 = arith.mulf %0, %1 : vector<8x32xf32>
    %cst = arith.constant dense<0.000000e+00> : vector<8xf32>
    %3 = vector.multi_reduction <add>, %2, %cst [1] : vector<8x32xf32> to vector<8xf32>
    %4 = vector.shape_cast %3 : vector<8xf32> to vector<8x1xf32>
    %5 = arith.mulf %0, %0 : vector<8x32xf32>
    %cst_3 = arith.constant dense<0.000000e+00> : vector<8xf32>
    %6 = vector.multi_reduction <add>, %5, %cst_3 [1] : vector<8x32xf32> to vector<8xf32>
    %7 = vector.shape_cast %6 : vector<8xf32> to vector<8x1xf32>
    %8 = arith.mulf %1, %1 : vector<8x32xf32>
    %cst_4 = arith.constant dense<0.000000e+00> : vector<8xf32>
    %9 = vector.multi_reduction <add>, %8, %cst_4 [1] : vector<8x32xf32> to vector<8xf32>
    %10 = vector.shape_cast %9 : vector<8xf32> to vector<8x1xf32>
    %cst_5 = arith.constant 9.99999996E-13 : f32
    %11 = vector.broadcast %cst_5 : f32 to vector<8x1xf32>
    %12 = arith.maximumf %7, %11 : vector<8x1xf32>
    %13 = math.rsqrt %12 : vector<8x1xf32>
    %14 = arith.mulf %4, %13 : vector<8x1xf32>
    %cst_6 = arith.constant 9.99999996E-13 : f32
    %15 = vector.broadcast %cst_6 : f32 to vector<8x1xf32>
    %16 = arith.maximumf %10, %15 : vector<8x1xf32>
    %17 = math.rsqrt %16 : vector<8x1xf32>
    %18 = arith.mulf %14, %17 : vector<8x1xf32>
    %cst_7 = arith.constant 1.000000e+00 : f32
    %19 = vector.broadcast %cst_7 : f32 to vector<8x1xf32>
    %20 = arith.subf %19, %18 : vector<8x1xf32>
    %21 = math.absf %20 : vector<8x1xf32>
    %22 = vector.shape_cast %21 : vector<8x1xf32> to vector<1x8x1xf32>
    %cst_8 = arith.constant dense<0.000000e+00> : vector<1xf32>
    %23 = vector.multi_reduction <add>, %22, %cst_8 [1, 2] : vector<1x8x1xf32> to vector<1xf32>
    %24 = vector.shape_cast %23 : vector<1xf32> to vector<1x1x1xf32>
    %25 = vector.extract %24[0, 0, 0] : f32 from vector<1x1x1xf32>
    %26 = vector.broadcast %25 : f32 to vector<1x8x128xf32>
    %c0_9 = arith.constant 0 : index
    %c0_10 = arith.constant 0 : index
    %c0_11 = arith.constant 0 : index
    %27 = vector.load %arg3[%c0_9, %c0_10, %c0_11] : memref<1x8x128xf32, #tpu.memory_space<vmem>>, vector<1x8x128xf32>
    tpu.vector_store %arg3[%c0_9, %c0_10, %c0_11], %26 {strides = array<i32>} : memref<1x8x128xf32, #tpu.memory_space<vmem>>, vector<1x8x128xf32>,
    return
  }
  func.func @transform_0(%arg0: i32) -> (i32, i32) {
    %c0_i32 = arith.constant 0 : i32
    %c0_i32_0 = arith.constant 0 : i32
    return %arg0, %c0_i32 : i32, i32
  }
  func.func @transform_1(%arg0: i32) -> (i32, i32) {
    %c0_i32 = arith.constant 0 : i32
    %c0_i32_0 = arith.constant 0 : i32
    return %arg0, %c0_i32 : i32, i32
  }
  func.func @transform_2(%arg0: i32) -> (i32, i32, i32) {
    %c0_i32 = arith.constant 0 : i32
    %c0_i32_0 = arith.constant 0 : i32
    %c0_i32_1 = arith.constant 0 : i32
    return %arg0, %c0_i32, %c0_i32_0 : i32, i32, i32
  }
}

</mosaic_0001>

<llo_original>
// kernel: tpu_custom_call.1
$region0: #{tpu_custom_call.1}
  #allocation0 [shape = 'u32[]', space=smem, size = 0x4, offset = 0x4, fixed_abs, tag = 'smem constant byte address 0x4 - core index']
  #allocation1 [shape = 'u32[72,128]{1,0:T(1,128)}', space=vmem, size = 0x9000, scoped, tag = 'internal scratch']
  %s0 = inlined_call_operand.hbm [shape: f32[8,32], index: 0, kind: input, shape index: {}]
  %s1 = inlined_call_operand.hbm [shape: f32[8,32], index: 1, kind: input, shape index: {}]
  %s2 = inlined_call_operand.hbm [shape: f32[1,8,128], index: 2, kind: output, shape index: {}]
  %s3 = sld [smem:[#allocation0]]
  $region26: #{tpu_custom_call.1} parent=0
    _
  %s5 = ssub.s32 1, %s3
  %s6 = scalar_select 0, %s5, %s3
  $region1: #{tpu_custom_call.1} parent=0
    #allocation2 [shape = 'u8[4096]{0}', space=vmem, size = 0x1000, scoped, tag = 'input window, operand 0, single buffered']
    #allocation3 [shape = 's32[1]{0}', space=sflag, size = 0x4, scoped, tag = 'scoped memory for tpu_custom_call.1']
    #allocation4 [shape = 's32[1]{0}', space=sflag, size = 0x4, scoped, tag = 'scoped memory for tpu_custom_call.1']
    #allocation5 [shape = 'u8[4096]{0}', space=vmem, size = 0x1000, scoped, tag = 'input window, operand 1, single buffered']
    #allocation6 [shape = 's32[1]{0}', space=sflag, size = 0x4, scoped, tag = 'scoped memory for tpu_custom_call.1']
    #allocation7 [shape = 'u8[4096]{0}', space=vmem, size = 0x1000, scoped, tag = 'output window, operand 0, single buffered']
    %7 = vsyncpa [#allocation3], 0
    %8 = vsyncpa [#allocation6], 0
    %9 = vsyncpa [#allocation4], 0
    // Predicated region
    $region2: #{tpu_custom_call.1} parent=1 // pred_check
      _
    $region3: #{tpu_custom_call.1} parent=1 // pred_check_branch
      %11 = sbr.rel (0) target = $region5
    $region4: #{tpu_custom_call.1} parent=1 // pred_region
      %13 = vsyncadd [#allocation3], 0
      %s15 = sshll.u32 %s0, 4
      %s16 = int_to_ptr.hbm [resolvable:$true] %s15
      %s17 = sshll.u32 [#allocation2], 4
      %s18 = int_to_ptr.vmem [resolvable:$true] %s17
      %20 = dma.hbm_to_vmem [thread:$0]  %s16, 128, %s18, [#allocation3]
    $region5: #{tpu_custom_call.1} parent=1 // pred_fallthru
      _
    // Predicated region
    $region6: #{tpu_custom_call.1} parent=1 // pred_check
      _
    $region7: #{tpu_custom_call.1} parent=1 // pred_check_branch
      %22 = sbr.rel (0) target = $region9
    $region8: #{tpu_custom_call.1} parent=1 // pred_region
      %24 = vsyncadd [#allocation6], 0
      %s26 = sshll.u32 %s1, 4
      %s27 = int_to_ptr.hbm [resolvable:$true] %s26
      %s28 = sshll.u32 [#allocation5], 4
      %s29 = int_to_ptr.vmem [resolvable:$true] %s28
      %31 = dma.hbm_to_vmem [thread:$0]  %s27, 128, %s29, [#allocation6]
    $region9: #{tpu_custom_call.1} parent=1 // pred_fallthru
      _
    // Predicated region
    $region10: #{tpu_custom_call.1} parent=1 // pred_check
      _
    $region11: #{tpu_custom_call.1} parent=1 // pred_check_branch
      %33 = sbr.rel (0) target = $region13
    $region12: #{tpu_custom_call.1} parent=1 // pred_region
      %35 = dma.done [#allocation3], 128
    $region13: #{tpu_custom_call.1} parent=1 // pred_fallthru
      _
    // Predicated region
    $region14: #{tpu_custom_call.1} parent=1 // pred_check
      _
    $region15: #{tpu_custom_call.1} parent=1 // pred_check_branch
      %37 = sbr.rel (0) target = $region17
    $region16: #{tpu_custom_call.1} parent=1 // pred_region
      %39 = dma.done [#allocation6], 128
    $region17: #{tpu_custom_call.1} parent=1 // pred_fallthru
      _
    %v40 = vld [vmem:[#allocation2] sm:$0xff]
    %v41 = vld [vmem:[#allocation5] sm:$0xff]
    %v42 = vmul.f32 %v40, %v41
    %vm43 = vcmask 261120
    %v44 = vsel %vm43, %v42, 0.0
    %45 = vadd.xlane.f32.xlu0 %v44
    %v46 = vpop.xlane.xlu0 %45
    %v47 = vmul.f32 %v40, %v40
    %v48 = vsel %vm43, %v47, 0.0
    %49 = vadd.xlane.f32.xlu0 %v48
    %v50 = vpop.xlane.xlu0 %49
    %v51 = vmul.f32 %v41, %v41
    %v52 = vsel %vm43, %v51, 0.0
    %53 = vadd.xlane.f32.xlu0 %v52
    %v54 = vpop.xlane.xlu0 %53
    %v55 = vmax.f32 %v50, 1e-12
    %v56 = vrsqrt.pop %v55
    %v57 = vmul.f32 %v56, %v55
    %v58 = vmul.f32 %v57, %v56
    %v59 = vmul.f32 0.5, %v58
    %v60 = vsub.f32 1.5, %v59
    %v61 = vmul.f32 %v56, %v60
    %vm62 = vweird.f32 %v55
    %vm63 = vweird.f32 %v56
    %vm64 = vmor %vm62, %vm63
    %v65 = vsel %vm64, %v56, %v61
    %v66 = vmul.f32 %v46, %v65
    %v67 = vmax.f32 %v54, 1e-12
    %v68 = vrsqrt.pop %v67
    %v69 = vmul.f32 %v68, %v67
    %v70 = vmul.f32 %v69, %v68
    %v71 = vmul.f32 0.5, %v70
    %v72 = vsub.f32 1.5, %v71
    %v73 = vmul.f32 %v68, %v72
    %vm74 = vweird.f32 %v67
    %vm75 = vweird.f32 %v68
    %vm76 = vmor %vm74, %vm75
    %v77 = vsel %vm76, %v68, %v73
    %v78 = vmul.f32 %v66, %v77
    %v79 = vsub.f32 1.0, %v78
    %v80 = vand.u32 2147483647, %v79
    %vm81 = vcmask 7168
    %v82 = vsel %vm81, %v80, 0.0
    %83 = vadd.xlane.f32.xlu0 %v82
    %v84 = vpop.xlane.xlu0 %83
    %v85 = vrot.slane %v84, 4
    %v86 = vadd.f32 %v84, %v85
    %v87 = vrot.slane %v86, 2
    %v88 = vadd.f32 %v86, %v87
    %v89 = vrot.slane %v88, 1
    %v90 = vadd.f32 %v88, %v89
    %s91 = vtos %v90
    %v92 = vstv %s91
    %93 = vst [vmem:[#allocation7] sm:$0xff] %v92
    // Predicated region
    $region18: #{tpu_custom_call.1} parent=1 // pred_check
      _
    $region19: #{tpu_custom_call.1} parent=1 // pred_check_branch
      %95 = sbr.rel (0) target = $region21
    $region20: #{tpu_custom_call.1} parent=1 // pred_region
      %97 = vsyncadd [#allocation4], 0
      %s99 = sshll.u32 [#allocation7], 4
      %s100 = int_to_ptr.vmem [resolvable:$true] %s99
      %s101 = sshll.u32 %s2, 4
      %s102 = int_to_ptr.hbm [resolvable:$true] %s101
      %104 = dma.vmem_to_hbm [thread:$0]  %s100, 128, %s102, [#allocation4]
    $region21: #{tpu_custom_call.1} parent=1 // pred_fallthru
      _
    // Predicated region
    $region22: #{tpu_custom_call.1} parent=1 // pred_check
      _
    $region23: #{tpu_custom_call.1} parent=1 // pred_check_branch
      %106 = sbr.rel (0) target = $region25
    $region24: #{tpu_custom_call.1} parent=1 // pred_region
      %108 = dma.done [#allocation4], 128
    $region25: #{tpu_custom_call.1} parent=1 // pred_fallthru
      _
    %109 = vsyncpa [#allocation3], 1
    %110 = vsyncpa [#allocation6], 1
    %111 = vsyncpa [#allocation4], 1

</llo_original>
